<compile_context>
chip_gen: v5e
topology: v5e:2x2
jax: 0.10.0
libtpu: 0.0.40
codegen_flags: <defaults>
</compile_context>

<pallas_src>
import functools

import numpy as np
import jax
import jax.numpy as jnp
from jax.experimental import pallas as pl
from jax.experimental.pallas import tpu as pltpu


# ----------------------------------------------------------------------------
# Weight-matrix construction (host side, NumPy).
# ----------------------------------------------------------------------------
def _bilinear_weight_matrix(in_size: int, out_size: int) -> np.ndarray:
    """(out_size, in_size) interpolation matrix matching
    F.interpolate(mode='bilinear', align_corners=False, antialias=False)."""
    scale = in_size / out_size
    dst = np.arange(out_size, dtype=np.float64)
    src = (dst + 0.5) * scale - 0.5
    src = np.maximum(src, 0.0)              # PyTorch clamps negative source idx
    i0 = np.floor(src).astype(np.int64)
    i0 = np.minimum(i0, in_size - 1)
    i1 = np.minimum(i0 + 1, in_size - 1)
    lam = np.clip(src - i0, 0.0, 1.0)
    w = np.zeros((out_size, in_size), dtype=np.float32)
    w[np.arange(out_size), i0] += (1.0 - lam).astype(np.float32)
    w[np.arange(out_size), i1] += lam.astype(np.float32)
    return w


def _get_padding(target_length, new_h, new_w):
    pad_h = target_length - new_h
    pad_w = target_length - new_w
    pad_top = pad_h // 2
    pad_bottom = pad_h - pad_top
    pad_left = pad_w // 2
    pad_right = pad_w - pad_left
    return pad_left, pad_right, pad_top, pad_bottom


def _padded_weight_matrices(H, W, new_h, new_w, T):
    """Bake the zero padding into the interpolation matrices.

    wh  : (T, H)  rows [pad_top, pad_top+new_h) hold row-interp weights,
                  all other rows zero  -> zero output rows.
    wwt : (W, T)  cols [pad_left, pad_left+new_w) hold transposed col-interp
                  weights, all other cols zero -> zero output cols.
    """
    pad_left, _pr, pad_top, _pb = _get_padding(T, new_h, new_w)
    wh = np.zeros((T, H), dtype=np.float32)
    wh[pad_top:pad_top + new_h, :] = _bilinear_weight_matrix(H, new_h)
    wwt = np.zeros((W, T), dtype=np.float32)
    wwt[:, pad_left:pad_left + new_w] = _bilinear_weight_matrix(W, new_w).T
    return wh, wwt


# ----------------------------------------------------------------------------
# Kernel body.
# ----------------------------------------------------------------------------
def _resize_pad_kernel(x_ref, wl_ref, wr_ref, o_ref, *, cb, rows_first,
                       compute_dtype):
    """out[c] = wl @ x[c] @ wr, padding baked into wl / wr.

    rows_first=True : wl = (tr, H) row tile, wr = full (W, T).
                      Pass 1 per channel, pass 2 fused over channels.
    rows_first=False: wl = full (T, H),      wr = (W, tc) column tile.
                      Pass 1 fused over channels, pass 2 per channel.
    """
    wl = wl_ref[...]
    wr = wr_ref[...]
    if rows_first:
        # Pass 1: (tr, H) @ (H, W) per channel.  All cb results feed the single
        # fused pass-2 matmul, so they must be live together anyway — the
        # static loop does not create unbounded extra live ranges.
        parts = [
            jnp.dot(wl, x_ref[c].astype(compute_dtype),
                    preferred_element_type=jnp.float32).astype(compute_dtype)
            for c in range(cb)
        ]
        tmp = parts[0] if cb == 1 else jnp.concatenate(parts, axis=0)  # (cb*tr, W)
        # Pass 2 (fused over channels): one (cb*tr, W) @ (W, T) MXU matmul.
        out = jnp.dot(tmp, wr, preferred_element_type=jnp.float32)     # (cb*tr, T)
        o_ref[...] = out.reshape(cb, wl.shape[0], wr.shape[1]).astype(o_ref.dtype)
    else:
        # Pass 1 (fused over channels): one (cb*H, W) @ (W, tc) MXU matmul.
        c_, h_, w_ = x_ref.shape
        x2 = x_ref[...].astype(compute_dtype).reshape(c_ * h_, w_)
        tmp = jnp.dot(x2, wr, preferred_element_type=jnp.float32)      # (cb*H, tc)
        tmp = tmp.reshape(cb, h_, wr.shape[1]).astype(compute_dtype)
        # Pass 2: (T, H) @ (H, tc) per channel; each result is stored
        # immediately, so live ranges stay bounded across iterations.
        for c in range(cb):
            o_ref[c] = jnp.dot(
                wl, tmp[c], preferred_element_type=jnp.float32
            ).astype(o_ref.dtype)


# ----------------------------------------------------------------------------
# Tiling / VMEM budgeting helpers.
# ----------------------------------------------------------------------------
def _vmem_capacity_bytes():
    """Physical VMEM per core; conservative (v7x-sized) fallback."""
    try:
        return int(pltpu.get_tpu_info().vmem_capacity_bytes)
    except Exception:
        return 64 << 20


def _pick_out_tile(T):
    """Output row/col tile: 256 = one full MXU pass on v6e/v7x (two on v5e)."""
    if T <= 256:
        return T
    for t in (256, 512, 128):
        if T % t == 0:
            return t
    # Non-divisible large T: keep 256 and let pl.cdiv pad the boundary block
    # rather than falling back to one giant (VMEM-blowing) tile.
    return 256


def _vmem_footprint(cb, H, W, tile, T, x_isz, w_isz, rows_first):
    """Approximate per-step VMEM bytes (double buffers + in-kernel temps)."""
    fp = 2 * cb * H * W * x_isz                  # x block (double-buffered)
    fp += cb * H * W * w_isz                     # in-kernel cast copy of x
    if rows_first:
        fp += 2 * tile * H * w_isz               # wh row tile
        fp += 2 * W * T * w_isz                  # wwt (constant idx, 2 bufs)
        fp += 2 * cb * tile * T * x_isz          # output block
        fp += cb * tile * W * (4 + w_isz)        # pass-1 f32 results + cast
        fp += cb * tile * T * 4                  # fused pass-2 f32 result
    else:
        fp += 2 * T * H * w_isz                  # wh full (constant idx, 2 bufs)
        fp += 2 * W * tile * w_isz               # wwt col tile
        fp += 2 * cb * T * tile * x_isz          # output block
        fp += cb * H * tile * (4 + w_isz)        # pass-1 f32 results + cast
        fp += T * tile * 4                       # per-channel pass-2 f32 result
    return fp


def _pick_channel_block(C, H, W, tile, T, x_isz, w_isz, rows_first, budget):
    for cb in range(C, 0, -1):
        if C % cb:
            continue
        if _vmem_footprint(cb, H, W, tile, T, x_isz, w_isz, rows_first) <= budget:
            return cb
    return 1


# ----------------------------------------------------------------------------
# Wrapper.
# ----------------------------------------------------------------------------
def resize_longest_side(x, target_length, resized_image_size, *,
                        compute_dtype=jnp.float32):
    """Pallas TPU implementation of ResizeLongestSide.forward for CHW input.

    compute_dtype=jnp.float32 (default) reproduces F.interpolate numerics;
    jnp.bfloat16 halves weight/temporary VMEM and gives ~3x MXU throughput on
    v5e/v6e at ~1e-3-level accuracy cost.
    """
    new_h, new_w = resized_image_size
    C, H, W = x.shape
    T = int(target_length)
    assert new_h <= T and new_w <= T
    # F.interpolate(mode='bilinear') requires float input; integer dtypes would
    # also truncate (not round) on the output cast, so reject them explicitly.
    assert jnp.issubdtype(x.dtype, jnp.floating), "x must be floating point"

    wh_np, wwt_np = _padded_weight_matrices(H, W, new_h, new_w, T)
    wl = jnp.asarray(wh_np, dtype=compute_dtype)    # (T, H) padded row weights
    wr = jnp.asarray(wwt_np, dtype=compute_dtype)   # (W, T) padded col weights^T

    # Matmul order: contract along the larger input dimension first.
    #   rows-first FLOPs/channel: T*W*(H + T);  cols-first: H*T*(W + T).
    rows_first = W * (H + T) <= H * (W + T)         # <=> W <= H

    x_isz = np.dtype(x.dtype).itemsize
    w_isz = np.dtype(compute_dtype).itemsize
    cap = _vmem_capacity_bytes()
    budget = (2 * cap) // 5                         # ~40% of physical VMEM

    tile = _pick_out_tile(T)                        # output row (or col) tile
    cb = _pick_channel_block(C, H, W, tile, T, x_isz, w_isz, rows_first, budget)
    est = _vmem_footprint(cb, H, W, tile, T, x_isz, w_isz, rows_first)
    vmem_limit = int(max(16 << 20,
                         min(est + est // 2 + (2 << 20), (cap * 7) // 8)))

    n_tiles = pl.cdiv(T, tile)
    if cb == C:
        # All channels in one block: 1-D grid over output tiles, so megacore
        # (v7x) shards the evenly-sized tile axis instead of a tiny channel
        # axis.  x / the constant-index weight keep the same block index across
        # all steps and are DMA'd exactly once.
        grid = (n_tiles,)
        semantics = ("parallel",)
        c_of = lambda *g: 0
        t_of = lambda *g: g[0]
    else:
        # Channels don't all fit: channel blocks outermost so x is fetched once
        # per channel block while output tiles sweep innermost.
        grid = (C // cb, n_tiles)
        semantics = ("parallel", "parallel")
        c_of = lambda *g: g[0]
        t_of = lambda *g: g[1]

    if rows_first:
        in_specs = [
            pl.BlockSpec((cb, H, W), lambda *g: (c_of(*g), 0, 0)),
            pl.BlockSpec((tile, H), lambda *g: (t_of(*g), 0)),
            # Constant block index -> DMA'd once, kept resident.
            pl.BlockSpec((W, T), lambda *g: (0, 0)),
        ]
        out_specs = pl.BlockSpec((cb, tile, T),
                                 lambda *g: (c_of(*g), t_of(*g), 0))
    else:
        in_specs = [
            pl.BlockSpec((cb, H, W), lambda *g: (c_of(*g), 0, 0)),
            pl.BlockSpec((T, H), lambda *g: (0, 0)),
            pl.BlockSpec((W, tile), lambda *g: (0, t_of(*g))),
        ]
        out_specs = pl.BlockSpec((cb, T, tile),
                                 lambda *g: (c_of(*g), 0, t_of(*g)))

    kernel = functools.partial(_resize_pad_kernel, cb=cb, rows_first=rows_first,
                               compute_dtype=compute_dtype)

    return pl.pallas_call(
        kernel,
        out_shape=jax.ShapeDtypeStruct((C, T, T), x.dtype),
        grid=grid,
        in_specs=in_specs,
        out_specs=out_specs,
        compiler_params=pltpu.CompilerParams(
            dimension_semantics=semantics,
            vmem_limit_bytes=vmem_limit),
    )(x, wl, wr)


# ----------------------------------------------------------------------------
# Pure-JAX reference (f32) + demo.
# ----------------------------------------------------------------------------
def _reference(x, target_length, resized_image_size):
    new_h, new_w = resized_image_size
    C, H, W = x.shape
    w_h = jnp.asarray(_bilinear_weight_matrix(H, new_h))
    w_w = jnp.asarray(_bilinear_weight_matrix(W, new_w))
    resized = jnp.einsum('oh,chw,pw->cop', w_h, x.astype(jnp.float32), w_w)
    pad_left, pad_right, pad_top, pad_bottom = _get_padding(
        target_length, new_h, new_w)
    return jnp.pad(resized,
                   ((0, 0), (pad_top, pad_bottom), (pad_left, pad_right)))


if __name__ == "__main__":
    key = jax.random.PRNGKey(0)

    # Module config: target_length = 16, resized_image_size = (12, 10);
    # CHW input of shape (4, 16, 16).  W <= H -> rows-first path.
    target_length = 16
    resized_image_size = (12, 10)
    x = jax.random.normal(key, (4, 16, 16), dtype=jnp.float32)

    out = jax.block_until_ready(
        resize_longest_side(x, target_length, resized_image_size))
    assert out.shape == (4, target_length, target_length), out.shape
    ref = _reference(x, target_length, resized_image_size)
    # f32 weights/compute: observed error ~1e-6; tolerance keeps margin for
    # MXU precision-mode differences across TPU generations.
    np.testing.assert_allclose(np.asarray(out), np.asarray(ref),
                               rtol=2e-2, atol=2e-2)

    # Landscape input (W > H) exercises the cols-first matmul order.
    x2 = jax.random.normal(jax.random.fold_in(key, 1), (3, 8, 16),
                           dtype=jnp.float32)
    out2 = jax.block_until_ready(
        resize_longest_side(x2, target_length, (6, 12)))
    assert out2.shape == (3, target_length, target_length), out2.shape
    ref2 = _reference(x2, target_length, (6, 12))
    np.testing.assert_allclose(np.asarray(out2), np.asarray(ref2),
                               rtol=2e-2, atol=2e-2)

    print("KERNEL_OK")
</pallas_src>

<mosaic_0001>
module attributes {stable_mosaic.version = 11 : i64} {
  func.func @_resize_pad_kernel(%arg0: i32, %arg1: memref<4x16x16xf32, #tpu.memory_space<vmem>>, %arg2: memref<16x16xf32, #tpu.memory_space<vmem>>, %arg3: memref<16x16xf32, #tpu.memory_space<vmem>>, %arg4: memref<4x16x16xf32, #tpu.memory_space<vmem>>) attributes {dimension_semantics = [#tpu.dimension_semantics<parallel>], iteration_bounds = array<i64: 1>, scalar_prefetch = 0 : i64, scratch_operands = 0 : i64, tpu.core_type = #tpu.core_type<tc>, window_params = [{pipeline_mode = #tpu.pipeline_mode<synchronous>, transform_indices = @transform_0, window_bounds = array<i64: 4, 16, 16>}, {transform_indices = @transform_1, window_bounds = array<i64: 16, 16>}, {pipeline_mode = #tpu.pipeline_mode<synchronous>, transform_indices = @transform_2, window_bounds = array<i64: 16, 16>}, {transform_indices = @transform_3, window_bounds = array<i64: 4, 16, 16>}]} {
    %c0 = arith.constant 0 : index
    %c0_0 = arith.constant 0 : index
    %0 = vector.load %arg2[%c0, %c0_0] : memref<16x16xf32, #tpu.memory_space<vmem>>, vector<16x16xf32>
    %c0_1 = arith.constant 0 : index
    %c0_2 = arith.constant 0 : index
    %1 = vector.load %arg3[%c0_1, %c0_2] : memref<16x16xf32, #tpu.memory_space<vmem>>, vector<16x16xf32>
    %c0_3 = arith.constant 0 : index
    %c0_4 = arith.constant 0 : index
    %c0_5 = arith.constant 0 : index
    %2 = vector.load %arg1[%c0_3, %c0_4, %c0_5] : memref<4x16x16xf32, #tpu.memory_space<vmem>>, vector<1x16x16xf32>
    %3 = vector.shape_cast %2 : vector<1x16x16xf32> to vector<16x16xf32>
    %cst = arith.constant dense<0.000000e+00> : vector<16x16xf32>
    %4 = tpu.matmul %0, %3, %cst {dimension_numbers = #tpu.dot_dimension_numbers<[1], [0], [0], [1], [0, 0, 1, 1], [], []>} : vector<16x16xf32>, vector<16x16xf32>, vector<16x16xf32> -> vector<16x16xf32>
    %c1 = arith.constant 1 : index
    %c0_6 = arith.constant 0 : index
    %c0_7 = arith.constant 0 : index
    %5 = vector.load %arg1[%c1, %c0_6, %c0_7] : memref<4x16x16xf32, #tpu.memory_space<vmem>>, vector<1x16x16xf32>
    %6 = vector.shape_cast %5 : vector<1x16x16xf32> to vector<16x16xf32>
    %cst_8 = arith.constant dense<0.000000e+00> : vector<16x16xf32>
    %7 = tpu.matmul %0, %6, %cst_8 {dimension_numbers = #tpu.dot_dimension_numbers<[1], [0], [0], [1], [0, 0, 1, 1], [], []>} : vector<16x16xf32>, vector<16x16xf32>, vector<16x16xf32> -> vector<16x16xf32>
    %c2 = arith.constant 2 : index
    %c0_9 = arith.constant 0 : index
    %c0_10 = arith.constant 0 : index
    %8 = vector.load %arg1[%c2, %c0_9, %c0_10] : memref<4x16x16xf32, #tpu.memory_space<vmem>>, vector<1x16x16xf32>
    %9 = vector.shape_cast %8 : vector<1x16x16xf32> to vector<16x16xf32>
    %cst_11 = arith.constant dense<0.000000e+00> : vector<16x16xf32>
    %10 = tpu.matmul %0, %9, %cst_11 {dimension_numbers = #tpu.dot_dimension_numbers<[1], [0], [0], [1], [0, 0, 1, 1], [], []>} : vector<16x16xf32>, vector<16x16xf32>, vector<16x16xf32> -> vector<16x16xf32>
    %c3 = arith.constant 3 : index
    %c0_12 = arith.constant 0 : index
    %c0_13 = arith.constant 0 : index
    %11 = vector.load %arg1[%c3, %c0_12, %c0_13] : memref<4x16x16xf32, #tpu.memory_space<vmem>>, vector<1x16x16xf32>
    %12 = vector.shape_cast %11 : vector<1x16x16xf32> to vector<16x16xf32>
    %cst_14 = arith.constant dense<0.000000e+00> : vector<16x16xf32>
    %13 = tpu.matmul %0, %12, %cst_14 {dimension_numbers = #tpu.dot_dimension_numbers<[1], [0], [0], [1], [0, 0, 1, 1], [], []>} : vector<16x16xf32>, vector<16x16xf32>, vector<16x16xf32> -> vector<16x16xf32>
    %14 = tpu.concatenate %4, %7, %10, %13 in 0 : vector<16x16xf32>, vector<16x16xf32>, vector<16x16xf32>, vector<16x16xf32> -> vector<64x16xf32>
    %cst_15 = arith.constant dense<0.000000e+00> : vector<64x16xf32>
    %15 = tpu.matmul %14, %1, %cst_15 {dimension_numbers = #tpu.dot_dimension_numbers<[1], [0], [0], [1], [0, 0, 1, 1], [], []>} : vector<64x16xf32>, vector<16x16xf32>, vector<64x16xf32> -> vector<64x16xf32>
    %16 = vector.shape_cast %15 : vector<64x16xf32> to vector<4x16x16xf32>
    %c0_16 = arith.constant 0 : index
    %c0_17 = arith.constant 0 : index
    %c0_18 = arith.constant 0 : index
    %17 = vector.load %arg4[%c0_16, %c0_17, %c0_18] : memref<4x16x16xf32, #tpu.memory_space<vmem>>, vector<4x16x16xf32>
    tpu.vector_store %arg4[%c0_16, %c0_17, %c0_18], %16 {strides = array<i32>} : memref<4x16x16xf32, #tpu.memory_space<vmem>>, vector<4x16x16xf32>,
    return
  }
  func.func @transform_0(%arg0: i32) -> (i32, i32, i32) {
    %c0_i32 = arith.constant 0 : i32
    %c0_i32_0 = arith.constant 0 : i32
    %c0_i32_1 = arith.constant 0 : i32
    %c0_i32_2 = arith.constant 0 : i32
    return %c0_i32, %c0_i32_0, %c0_i32_1 : i32, i32, i32
  }
  func.func @transform_1(%arg0: i32) -> (i32, i32) {
    %c0_i32 = arith.constant 0 : i32
    %c0_i32_0 = arith.constant 0 : i32
    return %arg0, %c0_i32 : i32, i32
  }
  func.func @transform_2(%arg0: i32) -> (i32, i32) {
    %c0_i32 = arith.constant 0 : i32
    %c0_i32_0 = arith.constant 0 : i32
    %c0_i32_1 = arith.constant 0 : i32
    return %c0_i32, %c0_i32_0 : i32, i32
  }
  func.func @transform_3(%arg0: i32) -> (i32, i32, i32) {
    %c0_i32 = arith.constant 0 : i32
    %c0_i32_0 = arith.constant 0 : i32
    %c0_i32_1 = arith.constant 0 : i32
    return %c0_i32, %arg0, %c0_i32_0 : i32, i32, i32
  }
}

</mosaic_0001>

<llo_original>
// kernel: tpu_custom_call.1
$region0: #{tpu_custom_call.1}
  #allocation0 [shape = 'u32[]', space=smem, size = 0x4, offset = 0x4, fixed_abs, tag = 'smem constant byte address 0x4 - core index']
  #allocation1 [shape = 'u32[72,128]{1,0:T(1,128)}', space=vmem, size = 0x9000, scoped, tag = 'internal scratch']
  %s0 = inlined_call_operand.hbm [shape: f32[4,16,16], index: 0, kind: input, shape index: {}]
  %s1 = inlined_call_operand.hbm [shape: f32[16,16], index: 1, kind: input, shape index: {}]
  %s2 = inlined_call_operand.hbm [shape: f32[16,16], index: 2, kind: input, shape index: {}]
  %s3 = inlined_call_operand.hbm [shape: f32[4,16,16], index: 3, kind: output, shape index: {}]
  %s4 = sld [smem:[#allocation0]]
  $region34: #{tpu_custom_call.1} parent=0
    _
  %s6 = ssub.s32 1, %s4
  %s7 = scalar_select 0, %s6, %s4
  $region1: #{tpu_custom_call.1} parent=0
    #allocation2 [shape = 'u8[32768]{0}', space=vmem, size = 0x8000, scoped, tag = 'input window, operand 0, single buffered']
    #allocation3 [shape = 's32[1]{0}', space=sflag, size = 0x4, scoped, tag = 'scoped memory for tpu_custom_call.1']
    #allocation4 [shape = 's32[1]{0}', space=sflag, size = 0x4, scoped, tag = 'scoped memory for tpu_custom_call.1']
    #allocation5 [shape = 'u8[8192]{0}', space=vmem, size = 0x2000, scoped, tag = 'input window, operand 1, single buffered']
    #allocation6 [shape = 's32[1]{0}', space=sflag, size = 0x4, scoped, tag = 'scoped memory for tpu_custom_call.1']
    #allocation7 [shape = 'u8[8192]{0}', space=vmem, size = 0x2000, scoped, tag = 'input window, operand 2, single buffered']
    #allocation8 [shape = 'u8[32768]{0}', space=vmem, size = 0x8000, scoped, tag = 'output window, operand 0, single buffered']
    %8 = vsyncpa [#allocation3], 0
    %9 = vsyncpa [#allocation6], 0
    %10 = vsyncpa [#allocation4], 0
    // Predicated region
    $region2: #{tpu_custom_call.1} parent=1 // pred_check
      _
    $region3: #{tpu_custom_call.1} parent=1 // pred_check_branch
      %12 = sbr.rel (0) target = $region5
    $region4: #{tpu_custom_call.1} parent=1 // pred_region
      %14 = vsyncadd [#allocation3], 0
      %s15 = sshll.u32 %s0, 4
      %s16 = int_to_ptr.hbm [resolvable:$true] %s15
      %s17 = sshll.u32 [#allocation2], 4
      %s18 = int_to_ptr.vmem [resolvable:$true] %s17
      %23 = dma.hbm_to_vmem [thread:$0]  %s16, 1024, %s18, [#allocation3], 128, 128, 8
    $region5: #{tpu_custom_call.1} parent=1 // pred_fallthru
      _
    // Predicated region
    $region6: #{tpu_custom_call.1} parent=1 // pred_check
      _
    $region7: #{tpu_custom_call.1} parent=1 // pred_check_branch
      %25 = sbr.rel (0) target = $region9
    $region8: #{tpu_custom_call.1} parent=1 // pred_region
      %27 = vsyncadd [#allocation6], 0
      %s28 = sshll.u32 %s1, 4
      %s29 = int_to_ptr.hbm [resolvable:$true] %s28
      %s30 = sshll.u32 [#allocation5], 4
      %s31 = int_to_ptr.vmem [resolvable:$true] %s30
      %36 = dma.hbm_to_vmem [thread:$0]  %s29, 256, %s31, [#allocation6], 128, 128, 8
    $region9: #{tpu_custom_call.1} parent=1 // pred_fallthru
      _
    // Predicated region
    $region10: #{tpu_custom_call.1} parent=1 // pred_check
      _
    $region11: #{tpu_custom_call.1} parent=1 // pred_check_branch
      %38 = sbr.rel (0) target = $region13
    $region12: #{tpu_custom_call.1} parent=1 // pred_region
      %40 = vsyncadd [#allocation6], 0
      %s41 = sshll.u32 %s2, 4
      %s42 = int_to_ptr.hbm [resolvable:$true] %s41
      %s43 = sshll.u32 [#allocation7], 4
      %s44 = int_to_ptr.vmem [resolvable:$true] %s43
      %49 = dma.hbm_to_vmem [thread:$0]  %s42, 256, %s44, [#allocation6], 128, 128, 8
    $region13: #{tpu_custom_call.1} parent=1 // pred_fallthru
      _
    // Predicated region
    $region14: #{tpu_custom_call.1} parent=1 // pred_check
      _
    $region15: #{tpu_custom_call.1} parent=1 // pred_check_branch
      %51 = sbr.rel (0) target = $region17
    $region16: #{tpu_custom_call.1} parent=1 // pred_region
      %53 = dma.done [#allocation3], 1024
    $region17: #{tpu_custom_call.1} parent=1 // pred_fallthru
      _
    // Predicated region
    $region18: #{tpu_custom_call.1} parent=1 // pred_check
      _
    $region19: #{tpu_custom_call.1} parent=1 // pred_check_branch
      %55 = sbr.rel (0) target = $region21
    $region20: #{tpu_custom_call.1} parent=1 // pred_region
      %57 = dma.done [#allocation6], 256
    $region21: #{tpu_custom_call.1} parent=1 // pred_fallthru
      _
    // Predicated region
    $region22: #{tpu_custom_call.1} parent=1 // pred_check
      _
    $region23: #{tpu_custom_call.1} parent=1 // pred_check_branch
      %59 = sbr.rel (0) target = $region25
    $region24: #{tpu_custom_call.1} parent=1 // pred_region
      %61 = dma.done [#allocation6], 256
    $region25: #{tpu_custom_call.1} parent=1 // pred_fallthru
      _
    %v62 = vld [vmem:[#allocation5] sm:$0xff]
    %v63 = vld [vmem:[#allocation5 + $0x8] sm:$0xff]
    %v64 = vld [vmem:[#allocation7] sm:$0xff]
    %v65 = vld [vmem:[#allocation7 + $0x8] sm:$0xff]
    %v66 = vld [vmem:[#allocation2] sm:$0xff]
    %v67 = vld [vmem:[#allocation2 + $0x8] sm:$0xff]
    %vm68 = vcmask 130048
    %v70 = vsel %vm68, %v62, 0
    %v73 = vsel %vm68, %v63, 0
    %75 = vmatpush.msra.mxu0 0.0
    %76 = vmatpush.msra.mxu0 0.0
    %77 = vmatpush.msra.mxu0 0.0
    %78 = vmatpush.msra.mxu0 0.0
    %79 = vmatpush.msra.mxu0 0.0
    %80 = vmatpush.msra.mxu0 0.0
    %81 = vmatpush.msra.mxu0 0.0
    %82 = vmatpush.msra.mxu0 0.0
    %83 = vmatpush.msra.mxu0 0.0
    %84 = vmatpush.msra.mxu0 0.0
    %85 = vmatpush.msra.mxu0 0.0
    %86 = vmatpush.msra.mxu0 0.0
    %87 = vmatpush.msra.mxu0 0.0
    %88 = vmatpush.msra.mxu0 0.0
    %89 = vmatpush.msra.mxu0 %v67
    %90 = vmatpush.msra.mxu0 %v66
    %91 = vmatmul.f32.gmra.mxu0 %v70
    %v92 = vpop.f32.mrf.mxu0
    %v93 = vadd.f32 0.0, %v92
    %94 = vmatmul.f32.gmra.mxu0 %v73
    %v95 = vpop.f32.mrf.mxu0
    %v96 = vadd.f32 0.0, %v95
    %97 = vdwg.mxu0
    %s98 = scalar_lea.vmem [#allocation2], 16
    %v99 = vld [vmem:[%s98] sm:$0xff]
    %v100 = vld [vmem:[%s98 + $0x8] sm:$0xff]
    %101 = vmatpush.msra.mxu0 0.0
    %102 = vmatpush.msra.mxu0 0.0
    %103 = vmatpush.msra.mxu0 0.0
    %104 = vmatpush.msra.mxu0 0.0
    %105 = vmatpush.msra.mxu0 0.0
    %106 = vmatpush.msra.mxu0 0.0
    %107 = vmatpush.msra.mxu0 0.0
    %108 = vmatpush.msra.mxu0 0.0
    %109 = vmatpush.msra.mxu0 0.0
    %110 = vmatpush.msra.mxu0 0.0
    %111 = vmatpush.msra.mxu0 0.0
    %112 = vmatpush.msra.mxu0 0.0
    %113 = vmatpush.msra.mxu0 0.0
    %114 = vmatpush.msra.mxu0 0.0
    %115 = vmatpush.msra.mxu0 %v100
    %116 = vmatpush.msra.mxu0 %v99
    %117 = vmatmul.f32.gmra.mxu0 %v70
    %v118 = vpop.f32.mrf.mxu0
    %v119 = vadd.f32 0.0, %v118
    %120 = vmatmul.f32.gmra.mxu0 %v73
    %v121 = vpop.f32.mrf.mxu0
    %v122 = vadd.f32 0.0, %v121
    %123 = vdwg.mxu0
    %s124 = scalar_lea.vmem [#allocation2], 32
    %v125 = vld [vmem:[%s124] sm:$0xff]
    %v126 = vld [vmem:[%s124 + $0x8] sm:$0xff]
    %127 = vmatpush.msra.mxu0 0.0
    %128 = vmatpush.msra.mxu0 0.0
    %129 = vmatpush.msra.mxu0 0.0
    %130 = vmatpush.msra.mxu0 0.0
    %131 = vmatpush.msra.mxu0 0.0
    %132 = vmatpush.msra.mxu0 0.0
    %133 = vmatpush.msra.mxu0 0.0
    %134 = vmatpush.msra.mxu0 0.0
    %135 = vmatpush.msra.mxu0 0.0
    %136 = vmatpush.msra.mxu0 0.0
    %137 = vmatpush.msra.mxu0 0.0
    %138 = vmatpush.msra.mxu0 0.0
    %139 = vmatpush.msra.mxu0 0.0
    %140 = vmatpush.msra.mxu0 0.0
    %141 = vmatpush.msra.mxu0 %v126
    %142 = vmatpush.msra.mxu0 %v125
    %143 = vmatmul.f32.gmra.mxu0 %v70
    %v144 = vpop.f32.mrf.mxu0
    %v145 = vadd.f32 0.0, %v144
    %146 = vmatmul.f32.gmra.mxu0 %v73
    %v147 = vpop.f32.mrf.mxu0
    %v148 = vadd.f32 0.0, %v147
    %149 = vdwg.mxu0
    %s150 = scalar_lea.vmem [#allocation2], 48
    %v151 = vld [vmem:[%s150] sm:$0xff]
    %v152 = vld [vmem:[%s150 + $0x8] sm:$0xff]
    %153 = vmatpush.msra.mxu0 0.0
    %154 = vmatpush.msra.mxu0 0.0
    %155 = vmatpush.msra.mxu0 0.0
    %156 = vmatpush.msra.mxu0 0.0
    %157 = vmatpush.msra.mxu0 0.0
    %158 = vmatpush.msra.mxu0 0.0
    %159 = vmatpush.msra.mxu0 0.0
    %160 = vmatpush.msra.mxu0 0.0
    %161 = vmatpush.msra.mxu0 0.0
    %162 = vmatpush.msra.mxu0 0.0
    %163 = vmatpush.msra.mxu0 0.0
    %164 = vmatpush.msra.mxu0 0.0
    %165 = vmatpush.msra.mxu0 0.0
    %166 = vmatpush.msra.mxu0 0.0
    %167 = vmatpush.msra.mxu0 %v152
    %168 = vmatpush.msra.mxu0 %v151
    %169 = vmatmul.f32.gmra.mxu0 %v70
    %v170 = vpop.f32.mrf.mxu0
    %v171 = vadd.f32 0.0, %v170
    %172 = vmatmul.f32.gmra.mxu0 %v73
    %v173 = vpop.f32.mrf.mxu0
    %v174 = vadd.f32 0.0, %v173
    %175 = vdwg.mxu0
    %v177 = vsel %vm68, %v93, 0
    %v180 = vsel %vm68, %v96, 0
    %v183 = vsel %vm68, %v119, 0
    %v186 = vsel %vm68, %v122, 0
    %v189 = vsel %vm68, %v145, 0
    %v192 = vsel %vm68, %v148, 0
    %v195 = vsel %vm68, %v171, 0
    %v198 = vsel %vm68, %v174, 0
    %200 = vmatpush.msra.mxu0 0.0
    %201 = vmatpush.msra.mxu0 0.0
    %202 = vmatpush.msra.mxu0 0.0
    %203 = vmatpush.msra.mxu0 0.0
    %204 = vmatpush.msra.mxu0 0.0
    %205 = vmatpush.msra.mxu0 0.0
    %206 = vmatpush.msra.mxu0 0.0
    %207 = vmatpush.msra.mxu0 0.0
    %208 = vmatpush.msra.mxu0 0.0
    %209 = vmatpush.msra.mxu0 0.0
    %210 = vmatpush.msra.mxu0 0.0
    %211 = vmatpush.msra.mxu0 0.0
    %212 = vmatpush.msra.mxu0 0.0
    %213 = vmatpush.msra.mxu0 0.0
    %214 = vmatpush.msra.mxu0 %v65
    %215 = vmatpush.msra.mxu0 %v64
    %216 = vmatmul.f32.gmra.mxu0 %v177
    %v217 = vpop.f32.mrf.mxu0
    %v218 = vadd.f32 0.0, %v217
    %219 = vmatmul.f32.gmra.mxu0 %v180
    %v220 = vpop.f32.mrf.mxu0
    %v221 = vadd.f32 0.0, %v220
    %222 = vmatmul.f32.gmra.mxu0 %v183
    %v223 = vpop.f32.mrf.mxu0
    %v224 = vadd.f32 0.0, %v223
    %225 = vmatmul.f32.gmra.mxu0 %v186
    %v226 = vpop.f32.mrf.mxu0
    %v227 = vadd.f32 0.0, %v226
    %228 = vmatmul.f32.gmra.mxu0 %v189
    %v229 = vpop.f32.mrf.mxu0
    %v230 = vadd.f32 0.0, %v229
    %231 = vmatmul.f32.gmra.mxu0 %v192
    %v232 = vpop.f32.mrf.mxu0
    %v233 = vadd.f32 0.0, %v232
    %234 = vmatmul.f32.gmra.mxu0 %v195
    %v235 = vpop.f32.mrf.mxu0
    %v236 = vadd.f32 0.0, %v235
    %237 = vmatmul.f32.gmra.mxu0 %v198
    %v238 = vpop.f32.mrf.mxu0
    %v239 = vadd.f32 0.0, %v238
    %240 = vdwg.mxu0
    %241 = vst.msk [vmem:[#allocation8] sm:$0xff] %vm68, %v218
    %242 = vst.msk [vmem:[#allocation8 + $0x8] sm:$0xff] %vm68, %v221
    %243 = vst.msk [vmem:[#allocation8 + $0x10] sm:$0xff] %vm68, %v224
    %244 = vst.msk [vmem:[#allocation8 + $0x18] sm:$0xff] %vm68, %v227
    %245 = vst.msk [vmem:[#allocation8 + $0x20] sm:$0xff] %vm68, %v230
    %246 = vst.msk [vmem:[#allocation8 + $0x28] sm:$0xff] %vm68, %v233
    %247 = vst.msk [vmem:[#allocation8 + $0x30] sm:$0xff] %vm68, %v236
    %248 = vst.msk [vmem:[#allocation8 + $0x38] sm:$0xff] %vm68, %v239
    // Predicated region
    $region26: #{tpu_custom_call.1} parent=1 // pred_check
      _
    $region27: #{tpu_custom_call.1} parent=1 // pred_check_branch
      %250 = sbr.rel (0) target = $region29
    $region28: #{tpu_custom_call.1} parent=1 // pred_region
      %252 = vsyncadd [#allocation4], 0
      %s253 = sshll.u32 [#allocation8], 4
      %s254 = int_to_ptr.vmem [resolvable:$true] %s253
      %s255 = sshll.u32 %s3, 4
      %s256 = int_to_ptr.hbm [resolvable:$true] %s255
      %261 = dma.vmem_to_hbm [thread:$0]  %s254, 1024, %s256, [#allocation4], 128, 128, 8
    $region29: #{tpu_custom_call.1} parent=1 // pred_fallthru
      _
    // Predicated region
    $region30: #{tpu_custom_call.1} parent=1 // pred_check
      _
    $region31: #{tpu_custom_call.1} parent=1 // pred_check_branch
      %263 = sbr.rel (0) target = $region33
    $region32: #{tpu_custom_call.1} parent=1 // pred_region
      %265 = dma.done [#allocation4], 1024
    $region33: #{tpu_custom_call.1} parent=1 // pred_fallthru
      _
    %266 = vsyncpa [#allocation3], 1
    %267 = vsyncpa [#allocation6], 1
    %268 = vsyncpa [#allocation4], 1

</llo_original>
